<compile_context>
chip_gen: v6e
topology: v6e:2x2x1
jax: 0.10.0
libtpu: 0.0.40
codegen_flags: <defaults>
</compile_context>

<pallas_src>
import jax
import jax.numpy as jnp
from jax.experimental import pallas as pl
from jax.experimental.pallas import tpu as pltpu


def _mlp_kernel(x_ref, w1_ref, b1_ref, w2_ref, b2_ref, w3_ref, b3_ref, o_ref):
    # Fused 3-layer MLP for one batch tile; all (small) weights live fully in VMEM.
    # Matmuls run in bf16 on the MXU with f32 accumulation; elementwise stays f32.
    x = x_ref[...]
    if x.dtype != jnp.bfloat16:           # trace-time check; no-op for bf16 inputs
        x = x.astype(jnp.bfloat16)
    h1 = jnp.dot(x, w1_ref[...], preferred_element_type=jnp.float32) + b1_ref[...]
    h1 = jnp.maximum(h1, 0.0)
    h2 = jnp.dot(h1.astype(jnp.bfloat16), w2_ref[...],
                 preferred_element_type=jnp.float32) + b2_ref[...]
    h2 = jnp.maximum(h2, 0.0)
    h3 = jnp.dot(h2.astype(jnp.bfloat16), w3_ref[...],
                 preferred_element_type=jnp.float32) + b3_ref[...]
    o_ref[...] = jax.nn.sigmoid(h3).astype(o_ref.dtype)


def _pick_tile_m(batch, fb, hid, x_itemsize, out_itemsize, weight_bytes,
                 *, max_tile_m=4096, vmem_budget=40 * 1024 * 1024):
    """Batch-tile size derived from a VMEM budget: double-buffered x/out tiles,
    f32 intermediates + bf16 recasts, double-buffered weights."""
    per_row = (2 * fb * x_itemsize        # x tile (double-buffered)
               + 2 * hid * out_itemsize   # out tile (double-buffered)
               + 6 * fb                   # h1 (f32) + bf16 recast
               + 10 * hid)                # h2/h3 (f32) + bf16 recasts
    avail = max(vmem_budget - 2 * weight_bytes, 16 * per_row)
    tile = min(max_tile_m, avail // per_row)
    if tile >= batch:
        if batch >= 1024:
            # Keep >= 2 "parallel" grid steps so both v7x TensorCores get work.
            tile = -(-batch // 2)            # cdiv(batch, 2)
            tile = -(-tile // 16) * 16       # round up to 16 (bf16 sublane packing)
            return min(tile, batch)
        return batch                         # small batch: one tile, no split overhead
    return max(16, (tile // 16) * 16)        # multiple of 16 for bf16 sublane packing


def dequantization_nonuniform(x, params, *, out_dtype=jnp.float32, max_tile_m=4096):
    """x: [batch, feedback_bits] (f32 or bf16). params: (in, out)-layout weights."""
    w1, b1, w2, b2, w3, b3 = (params[k] for k in ("w1", "b1", "w2", "b2", "w3", "b3"))
    batch, fb = x.shape
    hid = w2.shape[1]  # feedback_bits // B
    assert fb % 128 == 0, "feedback_bits must be a multiple of 128"

    # bf16 weights for the MXU; biases stay f32 (added after the f32 accumulate).
    w1, w2, w3 = (w.astype(jnp.bfloat16) for w in (w1, w2, w3))
    b1, b2, b3 = (b.astype(jnp.float32).reshape(1, -1) for b in (b1, b2, b3))

    weight_bytes = ((w1.size + w2.size + w3.size) * 2
                    + (b1.size + b2.size + b3.size) * 4)
    tile_m = _pick_tile_m(batch, fb, hid, x.dtype.itemsize,
                          jnp.dtype(out_dtype).itemsize, weight_bytes,
                          max_tile_m=max_tile_m)
    grid = (pl.cdiv(batch, tile_m),)  # ragged last tile: rows are independent, OOB
                                      # input rows are padding, OOB writes dropped.

    inv = lambda i: (0, 0)  # weights / biases: same grid-invariant block each step
    # NOTE: weights could be single-buffered via pipeline_mode=pl.Buffered(1); the
    # default double buffer costs <~100 KiB at fb=128 and is already counted in
    # the VMEM budget, so the default is kept for robustness.

    flops = 2 * batch * (fb * fb + fb * hid + hid * hid)
    bytes_accessed = (x.size * x.dtype.itemsize
                      + batch * hid * jnp.dtype(out_dtype).itemsize
                      + weight_bytes)

    return pl.pallas_call(
        _mlp_kernel,
        out_shape=jax.ShapeDtypeStruct((batch, hid), out_dtype),
        grid_spec=pltpu.PrefetchScalarGridSpec(
            num_scalar_prefetch=0,
            grid=grid,
            in_specs=[
                pl.BlockSpec((tile_m, fb), lambda i: (i, 0)),  # x tile
                pl.BlockSpec((fb, fb), inv),                   # W1 (bf16)
                pl.BlockSpec((1, fb), inv),                    # b1 (f32)
                pl.BlockSpec((fb, hid), inv),                  # W2 (bf16)
                pl.BlockSpec((1, hid), inv),                   # b2 (f32)
                pl.BlockSpec((hid, hid), inv),                 # W3 (bf16)
                pl.BlockSpec((1, hid), inv),                   # b3 (f32)
            ],
            out_specs=pl.BlockSpec((tile_m, hid), lambda i: (i, 0)),  # true shape, no pad
        ),
        compiler_params=pltpu.CompilerParams(
            dimension_semantics=("parallel",),
            vmem_limit_bytes=48 * 1024 * 1024,
        ),
        cost_estimate=pl.CostEstimate(
            flops=flops,
            transcendentals=batch * hid,  # sigmoid -> exp
            bytes_accessed=bytes_accessed,
        ),
    )(x, w1, b1, w2, b2, w3, b3)


def init_params(key, feedback_bits, B):
    """nn.Linear-style init (uniform +-1/sqrt(fan_in)); weights stored transposed
    as (in_features, out_features) and kept in bf16 in HBM (MXU-native)."""
    hid = feedback_bits // B
    ks = jax.random.split(key, 6)

    def linear(kw, kb, fan_in, fan_out):
        bound = 1.0 / float(fan_in) ** 0.5
        w = jax.random.uniform(kw, (fan_in, fan_out), jnp.float32, -bound, bound)
        b = jax.random.uniform(kb, (1, fan_out), jnp.float32, -bound, bound)
        return w.astype(jnp.bfloat16), b

    w1, b1 = linear(ks[0], ks[1], feedback_bits, feedback_bits)
    w2, b2 = linear(ks[2], ks[3], feedback_bits, hid)
    w3, b3 = linear(ks[4], ks[5], hid, hid)
    return dict(w1=w1, b1=b1, w2=w2, b2=b2, w3=w3, b3=b3)


def reference(x, p):
    w1, w2, w3 = (p[k].astype(jnp.float32) for k in ("w1", "w2", "w3"))
    h1 = jnp.maximum(x @ w1 + p["b1"], 0.0)
    h2 = jnp.maximum(h1 @ w2 + p["b2"], 0.0)
    return jax.nn.sigmoid(h2 @ w3 + p["b3"])


if __name__ == "__main__":
    feedback_bits = 128
    B = 4
    batch = 16

    key = jax.random.PRNGKey(0)
    kx, kp = jax.random.split(key)
    # Dequantizer input is quantized-bit-code-like; feed it in bf16 (exactly
    # representable, halves the dominant HBM read). No wrapper-side cast pass.
    x = jax.random.uniform(kx, (batch, feedback_bits), jnp.float32).astype(jnp.bfloat16)
    params = init_params(kp, feedback_bits, B)

    out = dequantization_nonuniform(x, params)
    out = jax.block_until_ready(out)

    ref = reference(x.astype(jnp.float32), params)
    assert out.shape == (batch, feedback_bits // B)
    # bf16 matmul inputs -> slightly looser tolerance than a pure-f32 pipeline
    assert jnp.allclose(out, ref, atol=2e-2, rtol=0.0), "mismatch vs pure-JAX reference"
    print("KERNEL_OK")
</pallas_src>

<mosaic_0001>
module attributes {stable_mosaic.version = 11 : i64} {
  func.func @_mlp_kernel(%arg0: i32, %arg1: memref<16x128xbf16, #tpu.memory_space<vmem>>, %arg2: memref<128x128xbf16, #tpu.memory_space<vmem>>, %arg3: memref<1x128xf32, #tpu.memory_space<vmem>>, %arg4: memref<128x32xbf16, #tpu.memory_space<vmem>>, %arg5: memref<1x32xf32, #tpu.memory_space<vmem>>, %arg6: memref<32x32xbf16, #tpu.memory_space<vmem>>, %arg7: memref<1x32xf32, #tpu.memory_space<vmem>>, %arg8: memref<16x32xf32, #tpu.memory_space<vmem>>) attributes {dimension_semantics = [#tpu.dimension_semantics<parallel>], iteration_bounds = array<i64: 1>, scalar_prefetch = 0 : i64, scratch_operands = 0 : i64, tpu.core_type = #tpu.core_type<tc>, window_params = [{transform_indices = @transform_0, window_bounds = array<i64: 16, 128>}, {pipeline_mode = #tpu.pipeline_mode<synchronous>, transform_indices = @transform_1, window_bounds = array<i64: 128, 128>}, {pipeline_mode = #tpu.pipeline_mode<synchronous>, transform_indices = @transform_2, window_bounds = array<i64: 1, 128>}, {pipeline_mode = #tpu.pipeline_mode<synchronous>, transform_indices = @transform_3, window_bounds = array<i64: 128, 32>}, {pipeline_mode = #tpu.pipeline_mode<synchronous>, transform_indices = @transform_4, window_bounds = array<i64: 1, 32>}, {pipeline_mode = #tpu.pipeline_mode<synchronous>, transform_indices = @transform_5, window_bounds = array<i64: 32, 32>}, {pipeline_mode = #tpu.pipeline_mode<synchronous>, transform_indices = @transform_6, window_bounds = array<i64: 1, 32>}, {transform_indices = @transform_7, window_bounds = array<i64: 16, 32>}]} {
    %c0 = arith.constant 0 : index
    %c0_0 = arith.constant 0 : index
    %0 = vector.load %arg1[%c0, %c0_0] : memref<16x128xbf16, #tpu.memory_space<vmem>>, vector<16x128xbf16>
    %c0_1 = arith.constant 0 : index
    %c0_2 = arith.constant 0 : index
    %1 = vector.load %arg2[%c0_1, %c0_2] : memref<128x128xbf16, #tpu.memory_space<vmem>>, vector<128x128xbf16>
    %cst = arith.constant dense<0.000000e+00> : vector<16x128xf32>
    %2 = tpu.matmul %0, %1, %cst {dimension_numbers = #tpu.dot_dimension_numbers<[1], [0], [0], [1], [0, 0, 1, 1], [], []>} : vector<16x128xbf16>, vector<128x128xbf16>, vector<16x128xf32> -> vector<16x128xf32>
    %c0_3 = arith.constant 0 : index
    %c0_4 = arith.constant 0 : index
    %3 = vector.load %arg3[%c0_3, %c0_4] : memref<1x128xf32, #tpu.memory_space<vmem>>, vector<1x128xf32>
    %4 = vector.broadcast %3 : vector<1x128xf32> to vector<16x128xf32>
    %5 = arith.addf %2, %4 : vector<16x128xf32>
    %cst_5 = arith.constant 0.000000e+00 : f32
    %6 = vector.broadcast %cst_5 : f32 to vector<16x128xf32>
    %7 = arith.maximumf %5, %6 : vector<16x128xf32>
    %8 = arith.truncf %7 : vector<16x128xf32> to vector<16x128xbf16>
    %c0_6 = arith.constant 0 : index
    %c0_7 = arith.constant 0 : index
    %9 = vector.load %arg4[%c0_6, %c0_7] : memref<128x32xbf16, #tpu.memory_space<vmem>>, vector<128x32xbf16>
    %cst_8 = arith.constant dense<0.000000e+00> : vector<16x32xf32>
    %10 = tpu.matmul %8, %9, %cst_8 {dimension_numbers = #tpu.dot_dimension_numbers<[1], [0], [0], [1], [0, 0, 1, 1], [], []>} : vector<16x128xbf16>, vector<128x32xbf16>, vector<16x32xf32> -> vector<16x32xf32>
    %c0_9 = arith.constant 0 : index
    %c0_10 = arith.constant 0 : index
    %11 = vector.load %arg5[%c0_9, %c0_10] : memref<1x32xf32, #tpu.memory_space<vmem>>, vector<1x32xf32>
    %12 = vector.broadcast %11 : vector<1x32xf32> to vector<16x32xf32>
    %13 = arith.addf %10, %12 : vector<16x32xf32>
    %cst_11 = arith.constant 0.000000e+00 : f32
    %14 = vector.broadcast %cst_11 : f32 to vector<16x32xf32>
    %15 = arith.maximumf %13, %14 : vector<16x32xf32>
    %16 = arith.truncf %15 : vector<16x32xf32> to vector<16x32xbf16>
    %c0_12 = arith.constant 0 : index
    %c0_13 = arith.constant 0 : index
    %17 = vector.load %arg6[%c0_12, %c0_13] : memref<32x32xbf16, #tpu.memory_space<vmem>>, vector<32x32xbf16>
    %cst_14 = arith.constant dense<0.000000e+00> : vector<16x32xf32>
    %18 = tpu.matmul %16, %17, %cst_14 {dimension_numbers = #tpu.dot_dimension_numbers<[1], [0], [0], [1], [0, 0, 1, 1], [], []>} : vector<16x32xbf16>, vector<32x32xbf16>, vector<16x32xf32> -> vector<16x32xf32>
    %c0_15 = arith.constant 0 : index
    %c0_16 = arith.constant 0 : index
    %19 = vector.load %arg7[%c0_15, %c0_16] : memref<1x32xf32, #tpu.memory_space<vmem>>, vector<1x32xf32>
    %20 = vector.broadcast %19 : vector<1x32xf32> to vector<16x32xf32>
    %21 = arith.addf %18, %20 : vector<16x32xf32>
    %22 = arith.negf %21 : vector<16x32xf32>
    %23 = math.exp %22 : vector<16x32xf32>
    %cst_17 = arith.constant 1.000000e+00 : f32
    %24 = vector.broadcast %cst_17 : f32 to vector<16x32xf32>
    %25 = arith.addf %24, %23 : vector<16x32xf32>
    %26 = arith.divf %24, %25 : vector<16x32xf32>
    %c0_18 = arith.constant 0 : index
    %c0_19 = arith.constant 0 : index
    %27 = vector.load %arg8[%c0_18, %c0_19] : memref<16x32xf32, #tpu.memory_space<vmem>>, vector<16x32xf32>
    tpu.vector_store %arg8[%c0_18, %c0_19], %26 {strides = array<i32>} : memref<16x32xf32, #tpu.memory_space<vmem>>, vector<16x32xf32>,
    return
  }
  func.func @transform_0(%arg0: i32) -> (i32, i32) {
    %c0_i32 = arith.constant 0 : i32
    %c0_i32_0 = arith.constant 0 : i32
    return %arg0, %c0_i32 : i32, i32
  }
  func.func @transform_1(%arg0: i32) -> (i32, i32) {
    %c0_i32 = arith.constant 0 : i32
    %c0_i32_0 = arith.constant 0 : i32
    %c0_i32_1 = arith.constant 0 : i32
    return %c0_i32, %c0_i32_0 : i32, i32
  }
  func.func @transform_2(%arg0: i32) -> (i32, i32) {
    %c0_i32 = arith.constant 0 : i32
    %c0_i32_0 = arith.constant 0 : i32
    %c0_i32_1 = arith.constant 0 : i32
    return %c0_i32, %c0_i32_0 : i32, i32
  }
  func.func @transform_3(%arg0: i32) -> (i32, i32) {
    %c0_i32 = arith.constant 0 : i32
    %c0_i32_0 = arith.constant 0 : i32
    %c0_i32_1 = arith.constant 0 : i32
    return %c0_i32, %c0_i32_0 : i32, i32
  }
  func.func @transform_4(%arg0: i32) -> (i32, i32) {
    %c0_i32 = arith.constant 0 : i32
    %c0_i32_0 = arith.constant 0 : i32
    %c0_i32_1 = arith.constant 0 : i32
    return %c0_i32, %c0_i32_0 : i32, i32
  }
  func.func @transform_5(%arg0: i32) -> (i32, i32) {
    %c0_i32 = arith.constant 0 : i32
    %c0_i32_0 = arith.constant 0 : i32
    %c0_i32_1 = arith.constant 0 : i32
    return %c0_i32, %c0_i32_0 : i32, i32
  }
  func.func @transform_6(%arg0: i32) -> (i32, i32) {
    %c0_i32 = arith.constant 0 : i32
    %c0_i32_0 = arith.constant 0 : i32
    %c0_i32_1 = arith.constant 0 : i32
    return %c0_i32, %c0_i32_0 : i32, i32
  }
  func.func @transform_7(%arg0: i32) -> (i32, i32) {
    %c0_i32 = arith.constant 0 : i32
    %c0_i32_0 = arith.constant 0 : i32
    return %arg0, %c0_i32 : i32, i32
  }
}

</mosaic_0001>

<llo_original>
// kernel: tpu_custom_call.1
$region0: #{tpu_custom_call.1}
  #allocation0 [shape = 'u32[]', space=smem, size = 0x4, offset = 0x4, fixed_abs, tag = 'smem constant byte address 0x4 - core index']
  #allocation1 [shape = 'u32[144,128]{1,0:T(1,128)}', space=vmem, size = 0x12000, scoped, tag = 'internal scratch']
  %s0 = inlined_call_operand.hbm [shape: bf16[16,128], index: 0, kind: input, shape index: {}]
  %s1 = inlined_call_operand.vmem [shape: bf16[128,128], index: 1, kind: input, shape index: {}]
  %s2 = inlined_call_operand.vmem [shape: f32[1,128], index: 2, kind: input, shape index: {}]
  %s3 = inlined_call_operand.vmem [shape: bf16[128,32], index: 3, kind: input, shape index: {}]
  %s4 = inlined_call_operand.vmem [shape: f32[1,32], index: 4, kind: input, shape index: {}]
  %s5 = inlined_call_operand.vmem [shape: bf16[32,32], index: 5, kind: input, shape index: {}]
  %s6 = inlined_call_operand.vmem [shape: f32[1,32], index: 6, kind: input, shape index: {}]
  %s7 = inlined_call_operand.hbm [shape: f32[16,32], index: 7, kind: output, shape index: {}]
  %s8 = sld [smem:[#allocation0]]
  $region42: #{tpu_custom_call.1} parent=0
    _
  %s10 = ssub.s32 1, %s8
  %s11 = scalar_select 0, %s10, %s8
  $region1: #{tpu_custom_call.1} parent=0
    #allocation2 [shape = 'u8[4096]{0}', space=vmem, size = 0x1000, scoped, tag = 'input window, operand 0, single buffered']
    #allocation3 [shape = 's32[1]{0}', space=sflag, size = 0x4, scoped, tag = 'scoped memory for tpu_custom_call.1']
    #allocation4 [shape = 's32[1]{0}', space=sflag, size = 0x4, scoped, tag = 'scoped memory for tpu_custom_call.1']
    #allocation5 [shape = 'u8[8192]{0}', space=vmem, size = 0x2000, scoped, tag = 'output window, operand 0, single buffered']
    %12 = vsyncpa [#allocation3], 0
    %13 = vsyncpa [#allocation4], 0
    // Predicated region
    $region2: #{tpu_custom_call.1} parent=1 // pred_check
      _
    $region3: #{tpu_custom_call.1} parent=1 // pred_check_branch
      %15 = sbr.rel (0) target = $region5
    $region4: #{tpu_custom_call.1} parent=1 // pred_region
      %s17 = ssub.s32 128, 128
      %18 = vsyncadd [#allocation3], %s17
      %s19 = sshll.u32 [#allocation2], 4
      %s20 = int_to_ptr.vmem [resolvable:$true] %s19
      %25 = dma.hbm_to_vmem [thread:$0]  %s0, 128, %s20, [#allocation3], 64, 64, 4
    $region5: #{tpu_custom_call.1} parent=1 // pred_fallthru
      _
    // Predicated region
    $region6: #{tpu_custom_call.1} parent=1 // pred_check
      _
    $region7: #{tpu_custom_call.1} parent=1 // pred_check_branch
      %27 = sbr.rel (0) target = $region9
    $region8: #{tpu_custom_call.1} parent=1 // pred_region
      _
    $region9: #{tpu_custom_call.1} parent=1 // pred_fallthru
      _
    // Predicated region
    $region10: #{tpu_custom_call.1} parent=1 // pred_check
      _
    $region11: #{tpu_custom_call.1} parent=1 // pred_check_branch
      %29 = sbr.rel (0) target = $region13
    $region12: #{tpu_custom_call.1} parent=1 // pred_region
      _
    $region13: #{tpu_custom_call.1} parent=1 // pred_fallthru
      _
    // Predicated region
    $region14: #{tpu_custom_call.1} parent=1 // pred_check
      _
    $region15: #{tpu_custom_call.1} parent=1 // pred_check_branch
      %31 = sbr.rel (0) target = $region17
    $region16: #{tpu_custom_call.1} parent=1 // pred_region
      _
    $region17: #{tpu_custom_call.1} parent=1 // pred_fallthru
      _
    // Predicated region
    $region18: #{tpu_custom_call.1} parent=1 // pred_check
      _
    $region19: #{tpu_custom_call.1} parent=1 // pred_check_branch
      %33 = sbr.rel (0) target = $region21
    $region20: #{tpu_custom_call.1} parent=1 // pred_region
      _
    $region21: #{tpu_custom_call.1} parent=1 // pred_fallthru
      _
    // Predicated region
    $region22: #{tpu_custom_call.1} parent=1 // pred_check
      _
    $region23: #{tpu_custom_call.1} parent=1 // pred_check_branch
      %35 = sbr.rel (0) target = $region25
    $region24: #{tpu_custom_call.1} parent=1 // pred_region
      _
    $region25: #{tpu_custom_call.1} parent=1 // pred_fallthru
      _
    // Predicated region
    $region26: #{tpu_custom_call.1} parent=1 // pred_check
      _
    $region27: #{tpu_custom_call.1} parent=1 // pred_check_branch
      %37 = sbr.rel (0) target = $region29
    $region28: #{tpu_custom_call.1} parent=1 // pred_region
      _
    $region29: #{tpu_custom_call.1} parent=1 // pred_fallthru
      _
    // Predicated region
    $region30: #{tpu_custom_call.1} parent=1 // pred_check
      _
    $region31: #{tpu_custom_call.1} parent=1 // pred_check_branch
      %39 = sbr.rel (0) target = $region33
    $region32: #{tpu_custom_call.1} parent=1 // pred_region
      %40 = dma.done [#allocation3], 128
    $region33: #{tpu_custom_call.1} parent=1 // pred_fallthru
      _
    %v42 = vld [vmem:[#allocation2] sm:$0xf]
    %v43 = vld [vmem:[#allocation2 + $0x4] sm:$0xf]
    %v44 = vld [vmem:[%s1] sm:$0xf]
    %v45 = vld [vmem:[%s1 + $0x4] sm:$0xf]
    %v46 = vld [vmem:[%s1 + $0x8] sm:$0xf]
    %v47 = vld [vmem:[%s1 + $0xc] sm:$0xf]
    %v48 = vld [vmem:[%s1 + $0x10] sm:$0xf]
    %v49 = vld [vmem:[%s1 + $0x14] sm:$0xf]
    %v50 = vld [vmem:[%s1 + $0x18] sm:$0xf]
    %v51 = vld [vmem:[%s1 + $0x1c] sm:$0xf]
    %v52 = vld [vmem:[%s1 + $0x20] sm:$0xf]
    %v53 = vld [vmem:[%s1 + $0x24] sm:$0xf]
    %v54 = vld [vmem:[%s1 + $0x28] sm:$0xf]
    %v55 = vld [vmem:[%s1 + $0x2c] sm:$0xf]
    %v56 = vld [vmem:[%s1 + $0x30] sm:$0xf]
    %v57 = vld [vmem:[%s1 + $0x34] sm:$0xf]
    %v58 = vld [vmem:[%s1 + $0x38] sm:$0xf]
    %v59 = vld [vmem:[%s1 + $0x3c] sm:$0xf]
    %v60 = vld [vmem:[%s2] sm:$0x1]
    %v62 = vlaneseq
    %v63 = vshrl.u32 %v62, 7
    %v64 = vsub.s32 0, %v63
    %v65 = vrot.slane %v60, %v64
    %v69 = vunpack.c.l.b16 %v42
    %v70 = vunpack.c.l.b16 %v43
    %v71 = vpack.c.b16 %v70, %v69
    %v89 = vunpack.c.l.b16 %v44
    %v90 = vunpack.c.l.b16 %v45
    %v91 = vunpack.c.l.b16 %v46
    %v92 = vunpack.c.l.b16 %v47
    %v93 = vunpack.c.l.b16 %v48
    %v94 = vunpack.c.l.b16 %v49
    %v95 = vunpack.c.l.b16 %v50
    %v96 = vunpack.c.l.b16 %v51
    %v97 = vunpack.c.l.b16 %v52
    %v98 = vunpack.c.l.b16 %v53
    %v99 = vunpack.c.l.b16 %v54
    %v100 = vunpack.c.l.b16 %v55
    %v101 = vunpack.c.l.b16 %v56
    %v102 = vunpack.c.l.b16 %v57
    %v103 = vunpack.c.l.b16 %v58
    %v104 = vunpack.c.l.b16 %v59
    %v105 = vpack.c.b16 %v90, %v89
    %v106 = vpack.c.b16 %v92, %v91
    %v107 = vpack.c.b16 %v94, %v93
    %v108 = vpack.c.b16 %v96, %v95
    %v109 = vpack.c.b16 %v98, %v97
    %v110 = vpack.c.b16 %v100, %v99
    %v111 = vpack.c.b16 %v102, %v101
    %v112 = vpack.c.b16 %v104, %v103
    %121 = vmatprep.subr.bf16.mxu0 0
    %122 = vmatpush1.bf16.msra.mxu0 %v112
    %123 = vmatprep.subr.bf16.mxu0 0
    %124 = vmatpush1.bf16.msra.mxu0 %v111
    %125 = vmatprep.subr.bf16.mxu0 0
    %126 = vmatpush1.bf16.msra.mxu0 %v110
    %127 = vmatprep.subr.bf16.mxu0 0
    %128 = vmatpush1.bf16.msra.mxu0 %v109
    %129 = vmatprep.subr.bf16.mxu0 0
    %130 = vmatpush1.bf16.msra.mxu0 %v108
    %131 = vmatprep.subr.bf16.mxu0 0
    %132 = vmatpush1.bf16.msra.mxu0 %v107
    %133 = vmatprep.subr.bf16.mxu0 0
    %134 = vmatpush1.bf16.msra.mxu0 %v106
    %135 = vmatprep.subr.bf16.mxu0 0
    %136 = vmatpush1.bf16.msra.mxu0 %v105
    %137 = vmatprep.subr.bf16.mxu0 0
    %138 = vmatpush2.bf16.msra.mxu0 0
    %139 = vmatprep.subr.bf16.mxu0 0
    %140 = vmatpush2.bf16.msra.mxu0 0
    %141 = vmatprep.subr.bf16.mxu0 0
    %142 = vmatpush2.bf16.msra.mxu0 0
    %143 = vmatprep.subr.bf16.mxu0 0
    %144 = vmatpush2.bf16.msra.mxu0 0
    %145 = vmatprep.subr.bf16.mxu0 0
    %146 = vmatpush2.bf16.msra.mxu0 0
    %147 = vmatprep.subr.bf16.mxu0 0
    %148 = vmatpush2.bf16.msra.mxu0 0
    %149 = vmatprep.subr.bf16.mxu0 0
    %150 = vmatpush2.bf16.msra.mxu0 0
    %151 = vmatprep.subr.bf16.mxu0 0
    %152 = vmatpush2.bf16.msra.mxu0 0
    %153 = vmatprep.mubr.bf16.mxu0 0
    %154 = vmatmul.mubr.bf16.gmra.mxu0 %v71
    %v155 = vpop.f32.mrf.mxu0
    %v156 = vadd.f32 %v65, %v155
    %v157 = vpop.f32.mrf.mxu0
    %v158 = vpop.f32.mrf.mxu0
    %v159 = vadd.f32 %v65, %v158
    %v160 = vpop.f32.mrf.mxu0
    %161 = vdwg.mxu0
    %v162 = vmax.f32 %v156, 0.0
    %v163 = vmax.f32 %v159, 0.0
    %v164 = vpack.c.bf16 %v163, %v162
    %v165 = vld [vmem:[%s3] sm:$0xf]
    %v166 = vld [vmem:[%s3 + $0x4] sm:$0xf]
    %v167 = vld [vmem:[%s3 + $0x8] sm:$0xf]
    %v168 = vld [vmem:[%s3 + $0xc] sm:$0xf]
    %v169 = vld [vmem:[%s3 + $0x10] sm:$0xf]
    %v170 = vld [vmem:[%s3 + $0x14] sm:$0xf]
    %v171 = vld [vmem:[%s3 + $0x18] sm:$0xf]
    %v172 = vld [vmem:[%s3 + $0x1c] sm:$0xf]
    %v173 = vld [vmem:[%s3 + $0x20] sm:$0xf]
    %v174 = vld [vmem:[%s3 + $0x24] sm:$0xf]
    %v175 = vld [vmem:[%s3 + $0x28] sm:$0xf]
    %v176 = vld [vmem:[%s3 + $0x2c] sm:$0xf]
    %v177 = vld [vmem:[%s3 + $0x30] sm:$0xf]
    %v178 = vld [vmem:[%s3 + $0x34] sm:$0xf]
    %v179 = vld [vmem:[%s3 + $0x38] sm:$0xf]
    %v180 = vld [vmem:[%s3 + $0x3c] sm:$0xf]
    %v181 = vld [vmem:[%s4] sm:$0x1]
    %v183 = vlaneseq
    %v184 = vshrl.u32 %v183, 7
    %v185 = vsub.s32 0, %v184
    %v186 = vrot.slane %v181, %v185
    %v204 = vunpack.c.l.b16 %v165
    %v205 = vunpack.c.l.b16 %v166
    %v206 = vunpack.c.l.b16 %v167
    %v207 = vunpack.c.l.b16 %v168
    %v208 = vunpack.c.l.b16 %v169
    %v209 = vunpack.c.l.b16 %v170
    %v210 = vunpack.c.l.b16 %v171
    %v211 = vunpack.c.l.b16 %v172
    %v212 = vunpack.c.l.b16 %v173
    %v213 = vunpack.c.l.b16 %v174
    %v214 = vunpack.c.l.b16 %v175
    %v215 = vunpack.c.l.b16 %v176
    %v216 = vunpack.c.l.b16 %v177
    %v217 = vunpack.c.l.b16 %v178
    %v218 = vunpack.c.l.b16 %v179
    %v219 = vunpack.c.l.b16 %v180
    %v220 = vpack.c.b16 %v205, %v204
    %v221 = vpack.c.b16 %v207, %v206
    %v222 = vpack.c.b16 %v209, %v208
    %v223 = vpack.c.b16 %v211, %v210
    %v224 = vpack.c.b16 %v213, %v212
    %v225 = vpack.c.b16 %v215, %v214
    %v226 = vpack.c.b16 %v217, %v216
    %v227 = vpack.c.b16 %v219, %v218
    %236 = vmatprep.subr.bf16.mxu0 0
    %237 = vmatpush1.bf16.msra.mxu0 %v227
    %238 = vmatprep.subr.bf16.mxu0 0
    %239 = vmatpush1.bf16.msra.mxu0 %v226
    %240 = vmatprep.subr.bf16.mxu0 0
    %241 = vmatpush1.bf16.msra.mxu0 %v225
    %242 = vmatprep.subr.bf16.mxu0 0
    %243 = vmatpush1.bf16.msra.mxu0 %v224
    %244 = vmatprep.subr.bf16.mxu0 0
    %245 = vmatpush1.bf16.msra.mxu0 %v223
    %246 = vmatprep.subr.bf16.mxu0 0
    %247 = vmatpush1.bf16.msra.mxu0 %v222
    %248 = vmatprep.subr.bf16.mxu0 0
    %249 = vmatpush1.bf16.msra.mxu0 %v221
    %250 = vmatprep.subr.bf16.mxu0 0
    %251 = vmatpush1.bf16.msra.mxu0 %v220
    %252 = vmatprep.subr.bf16.mxu0 0
    %253 = vmatpush2.bf16.msra.mxu0 0
    %254 = vmatprep.subr.bf16.mxu0 0
    %255 = vmatpush2.bf16.msra.mxu0 0
    %256 = vmatprep.subr.bf16.mxu0 0
    %257 = vmatpush2.bf16.msra.mxu0 0
    %258 = vmatprep.subr.bf16.mxu0 0
    %259 = vmatpush2.bf16.msra.mxu0 0
    %260 = vmatprep.subr.bf16.mxu0 0
    %261 = vmatpush2.bf16.msra.mxu0 0
    %262 = vmatprep.subr.bf16.mxu0 0
    %263 = vmatpush2.bf16.msra.mxu0 0
    %264 = vmatprep.subr.bf16.mxu0 0
    %265 = vmatpush2.bf16.msra.mxu0 0
    %266 = vmatprep.subr.bf16.mxu0 0
    %267 = vmatpush2.bf16.msra.mxu0 0
    %268 = vmatprep.mubr.bf16.mxu0 0
    %269 = vmatmul.mubr.bf16.gmra.mxu0 %v164
    %v270 = vpop.f32.mrf.mxu0
    %v271 = vadd.f32 %v186, %v270
    %v272 = vpop.f32.mrf.mxu0
    %v273 = vpop.f32.mrf.mxu0
    %v274 = vadd.f32 %v186, %v273
    %v275 = vpop.f32.mrf.mxu0
    %276 = vdwg.mxu0
    %v277 = vmax.f32 %v271, 0.0
    %v278 = vmax.f32 %v274, 0.0
    %v279 = vpack.c.bf16 %v278, %v277
    %v280 = vld [vmem:[%s5] sm:$0xf]
    %v281 = vld [vmem:[%s5 + $0x4] sm:$0xf]
    %v282 = vld [vmem:[%s5 + $0x8] sm:$0xf]
    %v283 = vld [vmem:[%s5 + $0xc] sm:$0xf]
    %v284 = vld [vmem:[%s6] sm:$0x1]
    %v286 = vlaneseq
    %v287 = vshrl.u32 %v286, 7
    %v288 = vsub.s32 0, %v287
    %v289 = vrot.slane %v284, %v288
    %v295 = vunpack.c.l.b16 %v280
    %v296 = vunpack.c.l.b16 %v281
    %v297 = vunpack.c.l.b16 %v282
    %v298 = vunpack.c.l.b16 %v283
    %v299 = vpack.c.b16 %v296, %v295
    %v300 = vpack.c.b16 %v298, %v297
    %vm303 = vcmask 261120
    %v305 = vsel %vm303, %v279, 0
    %307 = vmatprep.subr.bf16.mxu0 0
    %308 = vmatpush1.bf16.msra.mxu0 0
    %309 = vmatprep.subr.bf16.mxu0 0
    %310 = vmatpush1.bf16.msra.mxu0 0
    %311 = vmatprep.subr.bf16.mxu0 0
    %312 = vmatpush1.bf16.msra.mxu0 0
    %313 = vmatprep.subr.bf16.mxu0 0
    %314 = vmatpush1.bf16.msra.mxu0 0
    %315 = vmatprep.subr.bf16.mxu0 0
    %316 = vmatpush1.bf16.msra.mxu0 0
    %317 = vmatprep.subr.bf16.mxu0 0
    %318 = vmatpush1.bf16.msra.mxu0 0
    %319 = vmatprep.subr.bf16.mxu0 0
    %320 = vmatpush1.bf16.msra.mxu0 %v300
    %321 = vmatprep.subr.bf16.mxu0 0
    %322 = vmatpush1.bf16.msra.mxu0 %v299
    %323 = vmatprep.subr.bf16.mxu0 0
    %324 = vmatpush2.bf16.msra.mxu0 0
    %325 = vmatprep.subr.bf16.mxu0 0
    %326 = vmatpush2.bf16.msra.mxu0 0
    %327 = vmatprep.subr.bf16.mxu0 0
    %328 = vmatpush2.bf16.msra.mxu0 0
    %329 = vmatprep.subr.bf16.mxu0 0
    %330 = vmatpush2.bf16.msra.mxu0 0
    %331 = vmatprep.subr.bf16.mxu0 0
    %332 = vmatpush2.bf16.msra.mxu0 0
    %333 = vmatprep.subr.bf16.mxu0 0
    %334 = vmatpush2.bf16.msra.mxu0 0
    %335 = vmatprep.subr.bf16.mxu0 0
    %336 = vmatpush2.bf16.msra.mxu0 0
    %337 = vmatprep.subr.bf16.mxu0 0
    %338 = vmatpush2.bf16.msra.mxu0 0
    %339 = vmatprep.mubr.bf16.mxu0 0
    %340 = vmatmul.mubr.bf16.gmra.mxu0 %v305
    %v341 = vpop.f32.mrf.mxu0
    %v342 = vadd.f32 %v289, %v341
    %v343 = vpop.f32.mrf.mxu0
    %v344 = vpop.f32.mrf.mxu0
    %v345 = vadd.f32 %v289, %v344
    %v346 = vpop.f32.mrf.mxu0
    %347 = vdwg.mxu0
    %v348 = vxor.u32 %v342, 2147483648
    %v349 = vxor.u32 %v345, 2147483648
    %v350 = vmul.f32 %v348, 1.442695
    %v351 = vpow.pop %v350
    %v352 = vmul.f32 %v349, 1.442695
    %v353 = vpow.pop %v352
    %v354 = vadd.f32 %v351, 1.0
    %v355 = vadd.f32 %v353, 1.0
    %v356 = vrcp.pop %v354
    %v357 = vmul.f32 1.0, %v356
    %v358 = vrcp.pop %v355
    %v359 = vmul.f32 1.0, %v358
    %360 = vst.msk [vmem:[#allocation5] sm:$0xff] %vm303, %v357
    %361 = vst.msk [vmem:[#allocation5 + $0x8] sm:$0xff] %vm303, %v359
    // Predicated region
    $region34: #{tpu_custom_call.1} parent=1 // pred_check
      _
    $region35: #{tpu_custom_call.1} parent=1 // pred_check_branch
      %363 = sbr.rel (0) target = $region37
    $region36: #{tpu_custom_call.1} parent=1 // pred_region
      %s365 = ssub.s32 256, 256
      %366 = vsyncadd [#allocation4], %s365
      %s367 = sshll.u32 [#allocation5], 4
      %s368 = int_to_ptr.vmem [resolvable:$true] %s367
      %373 = dma.vmem_to_hbm [thread:$0]  %s368, 256, %s7, [#allocation4], 128, 128, 8
    $region37: #{tpu_custom_call.1} parent=1 // pred_fallthru
      _
    // Predicated region
    $region38: #{tpu_custom_call.1} parent=1 // pred_check
      _
    $region39: #{tpu_custom_call.1} parent=1 // pred_check_branch
      %375 = sbr.rel (0) target = $region41
    $region40: #{tpu_custom_call.1} parent=1 // pred_region
      %376 = dma.done [#allocation4], 256
    $region41: #{tpu_custom_call.1} parent=1 // pred_fallthru
      _
    %377 = vsyncpa [#allocation3], 1
    %378 = vsyncpa [#allocation4], 1

</llo_original>
